<compile_context>
chip_gen: v6e
topology: v6e:2x2x1
jax: 0.10.0
libtpu: 0.0.40
codegen_flags: <defaults>
</compile_context>

<pallas_src>
import jax
import jax.numpy as jnp
from jax import lax
from jax.experimental import pallas as pl
from jax.experimental.pallas import tpu as pltpu


_NEG_BIG = -1e30  # value used for padded similarity columns


def _round_up(x, m):
    return int(pl.cdiv(x, m) * m)


def _make_kernel(*, tm, tn, n, n_cols, resident_w):
    """Builds the InfoNCE online-softmax kernel for a (row_tile, col_tile) grid."""

    def kernel(s_ref, w_ref, loss_ref, m_sc, l_sc, d_sc):
        i = pl.program_id(0)   # row-tile index  ("parallel")
        j = pl.program_id(1)   # col-tile index  ("arbitrary" reduction axis)

        @pl.when(j == 0)
        def _():
            m_sc[...] = jnp.full_like(m_sc, -jnp.inf)
            l_sc[...] = jnp.zeros_like(l_sc)
            d_sc[...] = jnp.zeros_like(d_sc)

        if resident_w:
            # Whole w lives in VMEM; slice the current TN-column chunk.
            w_blk = w_ref[pl.ds(pl.multiple_of(j * tn, tn), tn), :]
        else:
            w_blk = w_ref[...]

        # sim = s @ w.T : contract the feature axis of BOTH operands directly
        # on the MXU (no transposed copy of w); bf16 operands, f32 accumulate.
        sim = lax.dot_general(
            s_ref[...], w_blk,
            dimension_numbers=(((1,), (1,)), ((), ())),
            preferred_element_type=jnp.float32,
        )

        if n_cols != n:  # static: padded columns exist -> mask them (f32)
            col_g = j * tn + lax.broadcasted_iota(jnp.int32, (tm, tn), 1)
            sim = jnp.where(col_g < n, sim, _NEG_BIG)

        # Flash-style online softmax statistics (all f32).
        m_prev = m_sc[...]
        m_new = jnp.maximum(m_prev, jnp.max(sim, axis=-1, keepdims=True))
        alpha = jnp.exp(m_prev - m_new)
        p = jnp.exp(sim - m_new)
        l_sc[...] = alpha * l_sc[...] + jnp.sum(p, axis=-1, keepdims=True)
        m_sc[...] = m_new

        # Positive (diagonal) logit: global row index == global column index.
        # Only tiles whose row/col ranges intersect the diagonal do the work.
        intersects = jnp.logical_and(j * tn < (i + 1) * tm,
                                     (j + 1) * tn > i * tm)

        @pl.when(intersects)
        def _():
            row_g = i * tm + lax.broadcasted_iota(jnp.int32, (tm, tn), 0)
            col_g = j * tn + lax.broadcasted_iota(jnp.int32, (tm, tn), 1)
            d_sc[...] += jnp.sum(jnp.where(row_g == col_g, sim, 0.0),
                                 axis=-1, keepdims=True)

        # Finalize: softmax rows sum to 1, so negative = 1 - positive (exact).
        @pl.when(j == pl.num_programs(1) - 1)
        def _():
            positive = jnp.exp(d_sc[...] - m_sc[...]) / l_sc[...]
            negative = 1.0 - positive
            ratio = positive / (negative + 1e-8)
            loss_ref[...] = -jnp.log(jnp.maximum(ratio, 1e-8))

    return kernel


def info_nce_loss(s_output, w_output, freq=False, *,
                  compute_dtype=jnp.bfloat16,
                  col_tile=128, max_row_tile=512,
                  resident_w_budget_bytes=24 * 1024 * 1024):
    """JAX/Pallas equivalent of InfoNCELoss.forward (freq=False path).

    s_output, w_output: (B, C, T) arrays (PyTorch NCT layout).
    """
    if freq:
        # TODO(synk): freq=True (ortho-normalized FFT magnitude) branch not implemented.
        raise NotImplementedError("freq=True path not implemented")

    b, c, t = s_output.shape
    n = b * t

    # Layout glue: (B, C, T) -> (B, T, C) -> (N, C); cast MXU operands to bf16
    # (softmax / mask / loss math stays in f32 inside the kernel).
    # TODO(synk): read (C, T_tile) blocks straight from the NCT layout to skip
    # this materialized transpose (needs per-batch T tiling + diagonal remap).
    s = jnp.transpose(s_output, (0, 2, 1)).reshape(n, c).astype(compute_dtype)
    w = jnp.transpose(w_output, (0, 2, 1)).reshape(n, c).astype(compute_dtype)

    tn = col_tile
    tm = int(min(max_row_tile, _round_up(n, 128)))
    n_rows = _round_up(n, tm)   # padded similarity rows (s rows)
    n_cols = _round_up(n, tn)   # padded similarity cols (w rows)

    if n_rows != n:
        s = jnp.pad(s, ((0, n_rows - n), (0, 0)))
    if n_cols != n:
        w = jnp.pad(w, ((0, n_cols - n), (0, 0)))

    row_tiles = n_rows // tm
    col_tiles = n_cols // tn

    itemsize = int(jnp.dtype(compute_dtype).itemsize)
    w_bytes = n_cols * c * itemsize
    # A whole-array BlockSpec may still be double-buffered -> count it twice.
    resident_w = 2 * w_bytes <= resident_w_budget_bytes

    if resident_w:
        # Constant block index -> w is DMA'd from HBM exactly once.
        w_spec = pl.BlockSpec((n_cols, c), lambda i, j: (0, 0))
    else:
        # Streamed fallback for very large N: deeper buffering hides the small
        # per-step DMA latency.
        w_spec = pl.BlockSpec((tn, c), lambda i, j: (j, 0),
                              pipeline_mode=pl.Buffered(3))

    kernel = _make_kernel(tm=tm, tn=tn, n=n, n_cols=n_cols,
                          resident_w=resident_w)

    # Explicit VMEM budget (v7x: 64 MiB physical / 32 MiB scoped default;
    # v5e: 16 MiB scoped default), sized from the actual working set.
    vmem_need = (2 * tm * c * itemsize                       # s double buffer
                 + (2 * w_bytes if resident_w
                    else 3 * tn * c * itemsize)              # w buffers
                 + 2 * tm * 4 + 3 * tm * 4                   # out + scratch
                 + 6 * tm * tn * 4)                          # f32 intermediates
    vmem_limit = int(min(64 * 1024 * 1024,
                         max(32 * 1024 * 1024, vmem_need + 8 * 1024 * 1024)))

    w_hbm_traffic = w_bytes if resident_w else row_tiles * w_bytes
    cost = pl.CostEstimate(
        flops=int(2 * n_rows * n_cols * c),
        transcendentals=int(n_rows * n_cols + n_rows * (col_tiles + 1)),
        bytes_accessed=int(n_rows * c * itemsize + w_hbm_traffic + n_rows * 4),
    )

    per_row_loss = pl.pallas_call(
        kernel,
        out_shape=jax.ShapeDtypeStruct((n_rows, 1), jnp.float32),
        grid_spec=pltpu.PrefetchScalarGridSpec(
            num_scalar_prefetch=0,
            grid=(row_tiles, col_tiles),
            in_specs=[
                pl.BlockSpec((tm, c), lambda i, j: (i, 0)),   # s row tile
                w_spec,                                       # w resident/stream
            ],
            out_specs=pl.BlockSpec((tm, 1), lambda i, j: (i, 0)),
            scratch_shapes=[pltpu.VMEM((tm, 1), jnp.float32)] * 3,
        ),
        compiler_params=pltpu.CompilerParams(
            dimension_semantics=("parallel", "arbitrary"),
            vmem_limit_bytes=vmem_limit),
        cost_estimate=cost,
    )(s, w)

    # Mean over the real (unpadded) rows only.
    return jnp.sum(per_row_loss[:n, 0]) / n


def _reference_loss(s_output, w_output, compute_dtype=jnp.float32):
    """Pure-JAX reference mirroring the PyTorch forward (freq=False)."""
    c = s_output.shape[1]
    s = jnp.transpose(s_output, (0, 2, 1)).reshape(-1, c).astype(compute_dtype)
    w = jnp.transpose(w_output, (0, 2, 1)).reshape(-1, c).astype(compute_dtype)
    sim = jnp.dot(s, w.T, preferred_element_type=jnp.float32)
    prob = jax.nn.softmax(sim, axis=-1)
    bs = s.shape[0]
    pos = prob[jnp.arange(bs), jnp.arange(bs)]
    neg = prob.sum(axis=-1) - pos
    return -jnp.log(jnp.maximum(pos / (neg + 1e-8), 1e-8)).mean()


if __name__ == "__main__":
    k1, k2, k3, k4 = jax.random.split(jax.random.PRNGKey(0), 4)
    k5, k6 = jax.random.split(jax.random.PRNGKey(1), 2)

    # Case 1: N = 16 -> single (padded) 128x128 tile, square-tile path.
    B, C, T = 2, 32, 8
    s1 = jax.random.normal(k1, (B, C, T), dtype=jnp.float32)
    w1 = jax.random.normal(k2, (B, C, T), dtype=jnp.float32)

    # Case 2: N = 272 -> TM=384, TN=128 rectangular tiles, 3 column tiles,
    # padded-column masking + diagonal spread over several column tiles.
    B2, C2, T2 = 2, 32, 136
    s2 = jax.random.normal(k3, (B2, C2, T2), dtype=jnp.float32)
    w2 = jax.random.normal(k4, (B2, C2, T2), dtype=jnp.float32)

    # Case 3: N = 800 -> 2 row tiles x 7 column tiles (TM=512), padded rows
    # and columns, diagonal intersecting different (i, j) tiles.
    B3, C3, T3 = 4, 32, 200
    s3 = jax.random.normal(k5, (B3, C3, T3), dtype=jnp.float32)
    w3 = jax.random.normal(k6, (B3, C3, T3), dtype=jnp.float32)

    cases = [(s1, w1, 1e-5), (s2, w2, 1e-5), (s3, w3, 1e-4)]
    for idx, (s_in, w_in, f32_tol) in enumerate(cases):
        # Exact-dtype check (f32 operands): validates tiling / diagonal / mask.
        out_f32 = jax.block_until_ready(
            info_nce_loss(s_in, w_in, compute_dtype=jnp.float32))
        ref_f32 = jax.block_until_ready(_reference_loss(s_in, w_in, jnp.float32))
        assert jnp.allclose(out_f32, ref_f32, rtol=f32_tol, atol=f32_tol), (
            idx, out_f32, ref_f32)

        # bf16-operand fast path (default) vs a matching bf16-input reference
        # (f32 accumulation in both); loose extra sanity check vs pure f32.
        out_bf16 = jax.block_until_ready(info_nce_loss(s_in, w_in))
        ref_bf16 = jax.block_until_ready(
            _reference_loss(s_in, w_in, jnp.bfloat16))
        assert jnp.allclose(out_bf16, ref_bf16, rtol=1e-2, atol=1e-2), (
            idx, out_bf16, ref_bf16)
        assert jnp.allclose(out_bf16, ref_f32, rtol=7e-2, atol=7e-2), (
            idx, out_bf16, ref_f32)

    print("KERNEL_OK")
</pallas_src>

<mosaic_0001>
module attributes {stable_mosaic.version = 11 : i64} {
  func.func @kernel(%arg0: i32, %arg1: i32, %arg2: memref<128x32xf32, #tpu.memory_space<vmem>>, %arg3: memref<128x32xf32, #tpu.memory_space<vmem>>, %arg4: memref<128x1xf32, #tpu.memory_space<vmem>>, %arg5: memref<128x1xf32, #tpu.memory_space<vmem>>, %arg6: memref<128x1xf32, #tpu.memory_space<vmem>>, %arg7: memref<128x1xf32, #tpu.memory_space<vmem>>) attributes {dimension_semantics = [#tpu.dimension_semantics<parallel>, #tpu.dimension_semantics<arbitrary>], iteration_bounds = array<i64: 1, 1>, scalar_prefetch = 0 : i64, scratch_operands = 3 : i64, tpu.core_type = #tpu.core_type<tc>, window_params = [{transform_indices = @transform_0, window_bounds = array<i64: 128, 32>}, {pipeline_mode = #tpu.pipeline_mode<synchronous>, transform_indices = @transform_1, window_bounds = array<i64: 128, 32>}, {transform_indices = @transform_2, window_bounds = array<i64: 128, 1>}]} {
    %c0_i32 = arith.constant 0 : i32
    %0 = arith.cmpi eq, %arg1, %c0_i32 : i32
    %1 = arith.extui %0 : i1 to i32
    %c0_i32_0 = arith.constant 0 : i32
    %2 = arith.cmpi ne, %1, %c0_i32_0 : i32
    scf.if %2 {
      %cst_23 = arith.constant 0xFF800000 : f32
      %47 = vector.broadcast %cst_23 : f32 to vector<128x1xf32>
      %c0_24 = arith.constant 0 : index
      %c0_25 = arith.constant 0 : index
      %48 = vector.load %arg5[%c0_24, %c0_25] : memref<128x1xf32, #tpu.memory_space<vmem>>, vector<128x1xf32>
      tpu.vector_store %arg5[%c0_24, %c0_25], %47 {strides = array<i32>} : memref<128x1xf32, #tpu.memory_space<vmem>>, vector<128x1xf32>,
      %cst_26 = arith.constant 0.000000e+00 : f32
      %49 = vector.broadcast %cst_26 : f32 to vector<128x1xf32>
      %c0_27 = arith.constant 0 : index
      %c0_28 = arith.constant 0 : index
      %50 = vector.load %arg6[%c0_27, %c0_28] : memref<128x1xf32, #tpu.memory_space<vmem>>, vector<128x1xf32>
      tpu.vector_store %arg6[%c0_27, %c0_28], %49 {strides = array<i32>} : memref<128x1xf32, #tpu.memory_space<vmem>>, vector<128x1xf32>,
      %cst_29 = arith.constant 0.000000e+00 : f32
      %51 = vector.broadcast %cst_29 : f32 to vector<128x1xf32>
      %c0_30 = arith.constant 0 : index
      %c0_31 = arith.constant 0 : index
      %52 = vector.load %arg7[%c0_30, %c0_31] : memref<128x1xf32, #tpu.memory_space<vmem>>, vector<128x1xf32>
      tpu.vector_store %arg7[%c0_30, %c0_31], %51 {strides = array<i32>} : memref<128x1xf32, #tpu.memory_space<vmem>>, vector<128x1xf32>,
    } else {
    }
    %c128_i32 = arith.constant 128 : i32
    %3 = arith.muli %arg1, %c128_i32 : i32
    %4 = tpu.assume_multiple %3, 128 : i32
    %5 = arith.index_cast %4 : i32 to index
    %c0 = arith.constant 0 : index
    %6 = vector.load %arg3[%5, %c0] : memref<128x32xf32, #tpu.memory_space<vmem>>, vector<128x32xf32>
    %c0_1 = arith.constant 0 : index
    %c0_2 = arith.constant 0 : index
    %7 = vector.load %arg2[%c0_1, %c0_2] : memref<128x32xf32, #tpu.memory_space<vmem>>, vector<128x32xf32>
    %cst = arith.constant dense<0.000000e+00> : vector<128x128xf32>
    %8 = tpu.matmul %7, %6, %cst {dimension_numbers = #tpu.dot_dimension_numbers<[1], [1], [0], [0], [0, 0, 1, 0], [], []>} : vector<128x32xf32>, vector<128x32xf32>, vector<128x128xf32> -> vector<128x128xf32>
    %c128_i32_3 = arith.constant 128 : i32
    %9 = arith.muli %arg1, %c128_i32_3 : i32
    %10 = tpu.iota {dimensions = array<i32: 1>} : vector<128x128xi32>
    %11 = vector.broadcast %9 : i32 to vector<128x128xi32>
    %12 = arith.addi %11, %10 : vector<128x128xi32>
    %c16_i32 = arith.constant 16 : i32
    %13 = vector.broadcast %c16_i32 : i32 to vector<128x128xi32>
    %14 = arith.cmpi slt, %12, %13 : vector<128x128xi32>
    %cst_4 = arith.constant -1.000000e+30 : f32
    %15 = vector.broadcast %cst_4 : f32 to vector<128x128xf32>
    %16 = arith.select %14, %8, %15 : vector<128x128xi1>, vector<128x128xf32>
    %c0_5 = arith.constant 0 : index
    %c0_6 = arith.constant 0 : index
    %17 = vector.load %arg5[%c0_5, %c0_6] : memref<128x1xf32, #tpu.memory_space<vmem>>, vector<128x1xf32>
    %cst_7 = arith.constant dense<0xFF800000> : vector<128xf32>
    %18 = vector.multi_reduction <maximumf>, %16, %cst_7 [1] : vector<128x128xf32> to vector<128xf32>
    %19 = vector.shape_cast %18 : vector<128xf32> to vector<128x1xf32>
    %20 = arith.maximumf %17, %19 : vector<128x1xf32>
    %21 = arith.subf %17, %20 : vector<128x1xf32>
    %22 = math.exp %21 : vector<128x1xf32>
    %23 = vector.broadcast %20 : vector<128x1xf32> to vector<128x128xf32>
    %24 = arith.subf %16, %23 : vector<128x128xf32>
    %25 = math.exp %24 : vector<128x128xf32>
    %c0_8 = arith.constant 0 : index
    %c0_9 = arith.constant 0 : index
    %26 = vector.load %arg6[%c0_8, %c0_9] : memref<128x1xf32, #tpu.memory_space<vmem>>, vector<128x1xf32>
    %27 = arith.mulf %22, %26 : vector<128x1xf32>
    %cst_10 = arith.constant dense<0.000000e+00> : vector<128xf32>
    %28 = vector.multi_reduction <add>, %25, %cst_10 [1] : vector<128x128xf32> to vector<128xf32>
    %29 = vector.shape_cast %28 : vector<128xf32> to vector<128x1xf32>
    %30 = arith.addf %27, %29 : vector<128x1xf32>
    %c0_11 = arith.constant 0 : index
    %c0_12 = arith.constant 0 : index
    %31 = vector.load %arg6[%c0_11, %c0_12] : memref<128x1xf32, #tpu.memory_space<vmem>>, vector<128x1xf32>
    tpu.vector_store %arg6[%c0_11, %c0_12], %30 {strides = array<i32>} : memref<128x1xf32, #tpu.memory_space<vmem>>, vector<128x1xf32>,
    %c0_13 = arith.constant 0 : index
    %c0_14 = arith.constant 0 : index
    %32 = vector.load %arg5[%c0_13, %c0_14] : memref<128x1xf32, #tpu.memory_space<vmem>>, vector<128x1xf32>
    tpu.vector_store %arg5[%c0_13, %c0_14], %20 {strides = array<i32>} : memref<128x1xf32, #tpu.memory_space<vmem>>, vector<128x1xf32>,
    %c128_i32_15 = arith.constant 128 : i32
    %33 = arith.muli %arg1, %c128_i32_15 : i32
    %c1_i32 = arith.constant 1 : i32
    %34 = arith.addi %arg0, %c1_i32 : i32
    %c128_i32_16 = arith.constant 128 : i32
    %35 = arith.muli %34, %c128_i32_16 : i32
    %36 = arith.cmpi slt, %33, %35 : i32
    %c1_i32_17 = arith.constant 1 : i32
    %37 = arith.addi %arg1, %c1_i32_17 : i32
    %c128_i32_18 = arith.constant 128 : i32
    %38 = arith.muli %37, %c128_i32_18 : i32
    %c128_i32_19 = arith.constant 128 : i32
    %39 = arith.muli %arg0, %c128_i32_19 : i32
    %40 = arith.cmpi sgt, %38, %39 : i32
    %41 = arith.andi %36, %40 : i1
    %42 = arith.extui %41 : i1 to i32
    %c0_i32_20 = arith.constant 0 : i32
    %43 = arith.cmpi ne, %42, %c0_i32_20 : i32
    scf.if %43 {
      %c128_i32_23 = arith.constant 128 : i32
      %47 = arith.muli %arg0, %c128_i32_23 : i32
      %48 = tpu.iota {dimensions = array<i32: 0>} : vector<128x128xi32>
      %49 = vector.broadcast %47 : i32 to vector<128x128xi32>
      %50 = arith.addi %49, %48 : vector<128x128xi32>
      %c128_i32_24 = arith.constant 128 : i32
      %51 = arith.muli %arg1, %c128_i32_24 : i32
      %52 = tpu.iota {dimensions = array<i32: 1>} : vector<128x128xi32>
      %53 = vector.broadcast %51 : i32 to vector<128x128xi32>
      %54 = arith.addi %53, %52 : vector<128x128xi32>
      %c0_25 = arith.constant 0 : index
      %c0_26 = arith.constant 0 : index
      %55 = vector.load %arg7[%c0_25, %c0_26] : memref<128x1xf32, #tpu.memory_space<vmem>>, vector<128x1xf32>
      %56 = arith.cmpi eq, %50, %54 : vector<128x128xi32>
      %cst_27 = arith.constant 0.000000e+00 : f32
      %57 = vector.broadcast %cst_27 : f32 to vector<128x128xf32>
      %58 = arith.select %56, %16, %57 : vector<128x128xi1>, vector<128x128xf32>
      %cst_28 = arith.constant dense<0.000000e+00> : vector<128xf32>
      %59 = vector.multi_reduction <add>, %58, %cst_28 [1] : vector<128x128xf32> to vector<128xf32>
      %60 = vector.shape_cast %59 : vector<128xf32> to vector<128x1xf32>
      %61 = arith.addf %55, %60 : vector<128x1xf32>
      %c0_29 = arith.constant 0 : index
      %c0_30 = arith.constant 0 : index
      %62 = vector.load %arg7[%c0_29, %c0_30] : memref<128x1xf32, #tpu.memory_space<vmem>>, vector<128x1xf32>
      tpu.vector_store %arg7[%c0_29, %c0_30], %61 {strides = array<i32>} : memref<128x1xf32, #tpu.memory_space<vmem>>, vector<128x1xf32>,
    } else {
    }
    %c0_i32_21 = arith.constant 0 : i32
    %44 = arith.cmpi eq, %arg1, %c0_i32_21 : i32
    %45 = arith.extui %44 : i1 to i32
    %c0_i32_22 = arith.constant 0 : i32
    %46 = arith.cmpi ne, %45, %c0_i32_22 : i32
    scf.if %46 {
      %c0_23 = arith.constant 0 : index
      %c0_24 = arith.constant 0 : index
      %47 = vector.load %arg7[%c0_23, %c0_24] : memref<128x1xf32, #tpu.memory_space<vmem>>, vector<128x1xf32>
      %c0_25 = arith.constant 0 : index
      %c0_26 = arith.constant 0 : index
      %48 = vector.load %arg5[%c0_25, %c0_26] : memref<128x1xf32, #tpu.memory_space<vmem>>, vector<128x1xf32>
      %49 = arith.subf %47, %48 : vector<128x1xf32>
      %50 = math.exp %49 : vector<128x1xf32>
      %c0_27 = arith.constant 0 : index
      %c0_28 = arith.constant 0 : index
      %51 = vector.load %arg6[%c0_27, %c0_28] : memref<128x1xf32, #tpu.memory_space<vmem>>, vector<128x1xf32>
      %52 = arith.divf %50, %51 : vector<128x1xf32>
      %cst_29 = arith.constant 1.000000e+00 : f32
      %53 = vector.broadcast %cst_29 : f32 to vector<128x1xf32>
      %54 = arith.subf %53, %52 : vector<128x1xf32>
      %cst_30 = arith.constant 9.99999993E-9 : f32
      %55 = vector.broadcast %cst_30 : f32 to vector<128x1xf32>
      %56 = arith.addf %54, %55 : vector<128x1xf32>
      %57 = arith.divf %52, %56 : vector<128x1xf32>
      %cst_31 = arith.constant 9.99999993E-9 : f32
      %58 = vector.broadcast %cst_31 : f32 to vector<128x1xf32>
      %59 = arith.maximumf %57, %58 : vector<128x1xf32>
      %60 = math.log %59 : vector<128x1xf32>
      %cst_32 = arith.constant 0.000000e+00 : f32
      %61 = vector.broadcast %cst_32 : f32 to vector<128x1xf32>
      %62 = arith.subf %61, %60 : vector<128x1xf32>
      %c0_33 = arith.constant 0 : index
      %c0_34 = arith.constant 0 : index
      %63 = vector.load %arg4[%c0_33, %c0_34] : memref<128x1xf32, #tpu.memory_space<vmem>>, vector<128x1xf32>
      tpu.vector_store %arg4[%c0_33, %c0_34], %62 {strides = array<i32>} : memref<128x1xf32, #tpu.memory_space<vmem>>, vector<128x1xf32>,
    } else {
    }
    return
  }
  func.func @transform_0(%arg0: i32, %arg1: i32) -> (i32, i32) {
    %c0_i32 = arith.constant 0 : i32
    %c0_i32_0 = arith.constant 0 : i32
    return %arg0, %c0_i32 : i32, i32
  }
  func.func @transform_1(%arg0: i32, %arg1: i32) -> (i32, i32) {
    %c0_i32 = arith.constant 0 : i32
    %c0_i32_0 = arith.constant 0 : i32
    %c0_i32_1 = arith.constant 0 : i32
    return %c0_i32, %c0_i32_0 : i32, i32
  }
  func.func @transform_2(%arg0: i32, %arg1: i32) -> (i32, i32) {
    %c0_i32 = arith.constant 0 : i32
    %c0_i32_0 = arith.constant 0 : i32
    return %arg0, %c0_i32 : i32, i32
  }
}

</mosaic_0001>

<llo_original>
// kernel: tpu_custom_call.1
$region0: #{tpu_custom_call.1}
  #allocation0 [shape = 'u32[]', space=smem, size = 0x4, offset = 0x4, fixed_abs, tag = 'smem constant byte address 0x4 - core index']
  #allocation1 [shape = 'u32[144,128]{1,0:T(1,128)}', space=vmem, size = 0x12000, scoped, tag = 'internal scratch']
  #allocation2 [shape = 'f32[128,1]{1,0:T(8,128)}', space=vmem, size = 0x10000, scoped, tag = 'scratch operand']
  #allocation3 [shape = 'f32[128,1]{1,0:T(8,128)}', space=vmem, size = 0x10000, scoped, tag = 'scratch operand']
  #allocation4 [shape = 'f32[128,1]{1,0:T(8,128)}', space=vmem, size = 0x10000, scoped, tag = 'scratch operand']
  %s0 = inlined_call_operand.vmem [shape: f32[128,32], index: 0, kind: input, shape index: {}]
  %s1 = inlined_call_operand.vmem [shape: f32[128,32], index: 1, kind: input, shape index: {}]
  %s2 = inlined_call_operand.vmem [shape: f32[128,1], index: 2, kind: output, shape index: {}]
  %s3 = sld [smem:[#allocation0]]
  $region30: #{tpu_custom_call.1} parent=0
    _
  %s5 = ssub.s32 1, %s3
  %s6 = scalar_select 0, %s5, %s3
  // Predicated region
  $region2: #{tpu_custom_call.1} parent=0 // pred_check
    _
  $region3: #{tpu_custom_call.1} parent=0 // pred_check_branch
    %8 = sbr.rel (0) target = $region5
  $region4: #{tpu_custom_call.1} parent=0 // pred_region
    _
  $region5: #{tpu_custom_call.1} parent=0 // pred_fallthru
    _
  // Predicated region
  $region6: #{tpu_custom_call.1} parent=0 // pred_check
    _
  $region7: #{tpu_custom_call.1} parent=0 // pred_check_branch
    %10 = sbr.rel (0) target = $region9
  $region8: #{tpu_custom_call.1} parent=0 // pred_region
    _
  $region9: #{tpu_custom_call.1} parent=0 // pred_fallthru
    _
  %p11 = scmp.eq.s32.totalorder 0, 0
  // Predicated region
  $region10: #{tpu_custom_call.1} parent=0 // pred_check
    %p12 = pneg %p11
  $region11: #{tpu_custom_call.1} parent=0 // pred_check_branch
    %14 = sbr.rel (%p12) target = $region13
  $region12: #{tpu_custom_call.1} parent=0 // pred_region
    %vm15 = vcmask 7168
    %16 = vst.msk [vmem:[#allocation2] sm:$0xff] %vm15, -inf
    %17 = vst.msk [vmem:[#allocation2 + $0x8] sm:$0xff] %vm15, -inf
    %18 = vst.msk [vmem:[#allocation2 + $0x10] sm:$0xff] %vm15, -inf
    %19 = vst.msk [vmem:[#allocation2 + $0x18] sm:$0xff] %vm15, -inf
    %20 = vst.msk [vmem:[#allocation2 + $0x20] sm:$0xff] %vm15, -inf
    %21 = vst.msk [vmem:[#allocation2 + $0x28] sm:$0xff] %vm15, -inf
    %22 = vst.msk [vmem:[#allocation2 + $0x30] sm:$0xff] %vm15, -inf
    %23 = vst.msk [vmem:[#allocation2 + $0x38] sm:$0xff] %vm15, -inf
    %24 = vst.msk [vmem:[#allocation2 + $0x40] sm:$0xff] %vm15, -inf
    %25 = vst.msk [vmem:[#allocation2 + $0x48] sm:$0xff] %vm15, -inf
    %26 = vst.msk [vmem:[#allocation2 + $0x50] sm:$0xff] %vm15, -inf
    %27 = vst.msk [vmem:[#allocation2 + $0x58] sm:$0xff] %vm15, -inf
    %28 = vst.msk [vmem:[#allocation2 + $0x60] sm:$0xff] %vm15, -inf
    %29 = vst.msk [vmem:[#allocation2 + $0x68] sm:$0xff] %vm15, -inf
    %30 = vst.msk [vmem:[#allocation2 + $0x70] sm:$0xff] %vm15, -inf
    %31 = vst.msk [vmem:[#allocation2 + $0x78] sm:$0xff] %vm15, -inf
    %32 = vst.msk [vmem:[#allocation3] sm:$0xff] %vm15, 0.0
    %33 = vst.msk [vmem:[#allocation3 + $0x8] sm:$0xff] %vm15, 0.0
    %34 = vst.msk [vmem:[#allocation3 + $0x10] sm:$0xff] %vm15, 0.0
    %35 = vst.msk [vmem:[#allocation3 + $0x18] sm:$0xff] %vm15, 0.0
    %36 = vst.msk [vmem:[#allocation3 + $0x20] sm:$0xff] %vm15, 0.0
    %37 = vst.msk [vmem:[#allocation3 + $0x28] sm:$0xff] %vm15, 0.0
    %38 = vst.msk [vmem:[#allocation3 + $0x30] sm:$0xff] %vm15, 0.0
    %39 = vst.msk [vmem:[#allocation3 + $0x38] sm:$0xff] %vm15, 0.0
    %40 = vst.msk [vmem:[#allocation3 + $0x40] sm:$0xff] %vm15, 0.0
    %41 = vst.msk [vmem:[#allocation3 + $0x48] sm:$0xff] %vm15, 0.0
    %42 = vst.msk [vmem:[#allocation3 + $0x50] sm:$0xff] %vm15, 0.0
    %43 = vst.msk [vmem:[#allocation3 + $0x58] sm:$0xff] %vm15, 0.0
    %44 = vst.msk [vmem:[#allocation3 + $0x60] sm:$0xff] %vm15, 0.0
    %45 = vst.msk [vmem:[#allocation3 + $0x68] sm:$0xff] %vm15, 0.0
    %46 = vst.msk [vmem:[#allocation3 + $0x70] sm:$0xff] %vm15, 0.0
    %47 = vst.msk [vmem:[#allocation3 + $0x78] sm:$0xff] %vm15, 0.0
    %48 = vst.msk [vmem:[#allocation4] sm:$0xff] %vm15, 0.0
    %49 = vst.msk [vmem:[#allocation4 + $0x8] sm:$0xff] %vm15, 0.0
    %50 = vst.msk [vmem:[#allocation4 + $0x10] sm:$0xff] %vm15, 0.0
    %51 = vst.msk [vmem:[#allocation4 + $0x18] sm:$0xff] %vm15, 0.0
    %52 = vst.msk [vmem:[#allocation4 + $0x20] sm:$0xff] %vm15, 0.0
    %53 = vst.msk [vmem:[#allocation4 + $0x28] sm:$0xff] %vm15, 0.0
    %54 = vst.msk [vmem:[#allocation4 + $0x30] sm:$0xff] %vm15, 0.0
    %55 = vst.msk [vmem:[#allocation4 + $0x38] sm:$0xff] %vm15, 0.0
    %56 = vst.msk [vmem:[#allocation4 + $0x40] sm:$0xff] %vm15, 0.0
    %57 = vst.msk [vmem:[#allocation4 + $0x48] sm:$0xff] %vm15, 0.0
    %58 = vst.msk [vmem:[#allocation4 + $0x50] sm:$0xff] %vm15, 0.0
    %59 = vst.msk [vmem:[#allocation4 + $0x58] sm:$0xff] %vm15, 0.0
    %60 = vst.msk [vmem:[#allocation4 + $0x60] sm:$0xff] %vm15, 0.0
    %61 = vst.msk [vmem:[#allocation4 + $0x68] sm:$0xff] %vm15, 0.0
    %62 = vst.msk [vmem:[#allocation4 + $0x70] sm:$0xff] %vm15, 0.0
    %63 = vst.msk [vmem:[#allocation4 + $0x78] sm:$0xff] %vm15, 0.0
  $region13: #{tpu_custom_call.1} parent=0 // pred_fallthru
    _
  %s64 = smul.u32 0, 128
  %s65 = scalar_lea.vmem %s1, %s64
  %v66 = vld [vmem:[%s65] sm:$0xff]
  %v67 = vld [vmem:[%s65 + $0x8] sm:$0xff]
  %v68 = vld [vmem:[%s65 + $0x10] sm:$0xff]
  %v69 = vld [vmem:[%s65 + $0x18] sm:$0xff]
  %v70 = vld [vmem:[%s65 + $0x20] sm:$0xff]
  %v71 = vld [vmem:[%s65 + $0x28] sm:$0xff]
  %v72 = vld [vmem:[%s65 + $0x30] sm:$0xff]
  %v73 = vld [vmem:[%s65 + $0x38] sm:$0xff]
  %v74 = vld [vmem:[%s65 + $0x40] sm:$0xff]
  %v75 = vld [vmem:[%s65 + $0x48] sm:$0xff]
  %v76 = vld [vmem:[%s65 + $0x50] sm:$0xff]
  %v77 = vld [vmem:[%s65 + $0x58] sm:$0xff]
  %v78 = vld [vmem:[%s65 + $0x60] sm:$0xff]
  %v79 = vld [vmem:[%s65 + $0x68] sm:$0xff]
  %v80 = vld [vmem:[%s65 + $0x70] sm:$0xff]
  %v81 = vld [vmem:[%s65 + $0x78] sm:$0xff]
  %v82 = vld [vmem:[%s0] sm:$0xff]
  %v83 = vld [vmem:[%s0 + $0x8] sm:$0xff]
  %v84 = vld [vmem:[%s0 + $0x10] sm:$0xff]
  %v85 = vld [vmem:[%s0 + $0x18] sm:$0xff]
  %v86 = vld [vmem:[%s0 + $0x20] sm:$0xff]
  %v87 = vld [vmem:[%s0 + $0x28] sm:$0xff]
  %v88 = vld [vmem:[%s0 + $0x30] sm:$0xff]
  %v89 = vld [vmem:[%s0 + $0x38] sm:$0xff]
  %v90 = vld [vmem:[%s0 + $0x40] sm:$0xff]
  %v91 = vld [vmem:[%s0 + $0x48] sm:$0xff]
  %v92 = vld [vmem:[%s0 + $0x50] sm:$0xff]
  %v93 = vld [vmem:[%s0 + $0x58] sm:$0xff]
  %v94 = vld [vmem:[%s0 + $0x60] sm:$0xff]
  %v95 = vld [vmem:[%s0 + $0x68] sm:$0xff]
  %v96 = vld [vmem:[%s0 + $0x70] sm:$0xff]
  %v97 = vld [vmem:[%s0 + $0x78] sm:$0xff]
  %vm98 = vcmask 261120
  %v100 = vsel %vm98, %v82, 0
  %v103 = vsel %vm98, %v83, 0
  %v106 = vsel %vm98, %v84, 0
  %v109 = vsel %vm98, %v85, 0
  %v112 = vsel %vm98, %v86, 0
  %v115 = vsel %vm98, %v87, 0
  %v118 = vsel %vm98, %v88, 0
  %v121 = vsel %vm98, %v89, 0
  %v124 = vsel %vm98, %v90, 0
  %v127 = vsel %vm98, %v91, 0
  %v130 = vsel %vm98, %v92, 0
  %v133 = vsel %vm98, %v93, 0
  %v136 = vsel %vm98, %v94, 0
  %v139 = vsel %vm98, %v95, 0
  %v142 = vsel %vm98, %v96, 0
  %v145 = vsel %vm98, %v97, 0
  %v148 = vsel %vm98, %v66, 0
  %v151 = vsel %vm98, %v67, 0
  %v154 = vsel %vm98, %v68, 0
  %v157 = vsel %vm98, %v69, 0
  %v160 = vsel %vm98, %v70, 0
  %v163 = vsel %vm98, %v71, 0
  %v166 = vsel %vm98, %v72, 0
  %v169 = vsel %vm98, %v73, 0
  %v172 = vsel %vm98, %v74, 0
  %v175 = vsel %vm98, %v75, 0
  %v178 = vsel %vm98, %v76, 0
  %v181 = vsel %vm98, %v77, 0
  %v184 = vsel %vm98, %v78, 0
  %v187 = vsel %vm98, %v79, 0
  %v190 = vsel %vm98, %v80, 0
  %v193 = vsel %vm98, %v81, 0
  %195 = vmatprep.subr.mxu0 0.0
  %196 = vmatpush1.xpose.msra.mxu0 %v193
  %197 = vmatprep.subr.mxu0 0.0
  %198 = vmatpush1.xpose.msra.mxu0 %v190
  %199 = vmatprep.subr.mxu0 0.0
  %200 = vmatpush1.xpose.msra.mxu0 %v187
  %201 = vmatprep.subr.mxu0 0.0
  %202 = vmatpush1.xpose.msra.mxu0 %v184
  %203 = vmatprep.subr.mxu0 0.0
  %204 = vmatpush1.xpose.msra.mxu0 %v181
  %205 = vmatprep.subr.mxu0 0.0
  %206 = vmatpush1.xpose.msra.mxu0 %v178
  %207 = vmatprep.subr.mxu0 0.0
  %208 = vmatpush1.xpose.msra.mxu0 %v175
  %209 = vmatprep.subr.mxu0 0.0
  %210 = vmatpush1.xpose.msra.mxu0 %v172
  %211 = vmatprep.subr.mxu0 0.0
  %212 = vmatpush1.xpose.msra.mxu0 %v169
  %213 = vmatprep.subr.mxu0 0.0
  %214 = vmatpush1.xpose.msra.mxu0 %v166
  %215 = vmatprep.subr.mxu0 0.0
  %216 = vmatpush1.xpose.msra.mxu0 %v163
  %217 = vmatprep.subr.mxu0 0.0
  %218 = vmatpush1.xpose.msra.mxu0 %v160
  %219 = vmatprep.subr.mxu0 0.0
  %220 = vmatpush1.xpose.msra.mxu0 %v157
  %221 = vmatprep.subr.mxu0 0.0
  %222 = vmatpush1.xpose.msra.mxu0 %v154
  %223 = vmatprep.subr.mxu0 0.0
  %224 = vmatpush1.xpose.msra.mxu0 %v151
  %225 = vmatprep.subr.mxu0 0.0
  %226 = vmatpush1.xpose.msra.mxu0 %v148
  %227 = vmatprep.subr.mxu0 0.0
  %228 = vmatpush2.xpose.msra.mxu0 0.0
  %229 = vmatprep.subr.mxu0 0.0
  %230 = vmatpush2.xpose.msra.mxu0 0.0
  %231 = vmatprep.subr.mxu0 0.0
  %232 = vmatpush2.xpose.msra.mxu0 0.0
  %233 = vmatprep.subr.mxu0 0.0
  %234 = vmatpush2.xpose.msra.mxu0 0.0
  %235 = vmatprep.subr.mxu0 0.0
  %236 = vmatpush2.xpose.msra.mxu0 0.0
  %237 = vmatprep.subr.mxu0 0.0
  %238 = vmatpush2.xpose.msra.mxu0 0.0
  %239 = vmatprep.subr.mxu0 0.0
  %240 = vmatpush2.xpose.msra.mxu0 0.0
  %241 = vmatprep.subr.mxu0 0.0
  %242 = vmatpush2.xpose.msra.mxu0 0.0
  %243 = vmatprep.subr.mxu0 0.0
  %244 = vmatpush2.xpose.msra.mxu0 0.0
  %245 = vmatprep.subr.mxu0 0.0
  %246 = vmatpush2.xpose.msra.mxu0 0.0
  %247 = vmatprep.subr.mxu0 0.0
  %248 = vmatpush2.xpose.msra.mxu0 0.0
  %249 = vmatprep.subr.mxu0 0.0
  %250 = vmatpush2.xpose.msra.mxu0 0.0
  %251 = vmatprep.subr.mxu0 0.0
  %252 = vmatpush2.xpose.msra.mxu0 0.0
  %253 = vmatprep.subr.mxu0 0.0
  %254 = vmatpush2.xpose.msra.mxu0 0.0
  %255 = vmatprep.subr.mxu0 0.0
  %256 = vmatpush2.xpose.msra.mxu0 0.0
  %257 = vmatprep.subr.mxu0 0.0
  %258 = vmatpush2.xpose.msra.mxu0 0.0
  %259 = vmatprep.mubr.f32.mxu0 0.0
  %260 = vmatmul.mubr.f32.gmra.mxu0 %v100
  %v261 = vpop.f32.mrf.mxu0
  %v262 = vadd.f32 0.0, %v261
  %v263 = vpop.f32.mrf.mxu0
  %264 = vmatprep.mubr.f32.mxu0 0.0
  %265 = vmatmul.mubr.f32.gmra.mxu0 %v103
  %v266 = vpop.f32.mrf.mxu0
  %v267 = vadd.f32 0.0, %v266
  %v268 = vpop.f32.mrf.mxu0
  %269 = vmatprep.mubr.f32.mxu0 0.0
  %270 = vmatmul.mubr.f32.gmra.mxu0 %v106
  %v271 = vpop.f32.mrf.mxu0
  %v272 = vadd.f32 0.0, %v271
  %v273 = vpop.f32.mrf.mxu0
  %274 = vmatprep.mubr.f32.mxu0 0.0
  %275 = vmatmul.mubr.f32.gmra.mxu0 %v109
  %v276 = vpop.f32.mrf.mxu0
  %v277 = vadd.f32 0.0, %v276
  %v278 = vpop.f32.mrf.mxu0
  %279 = vmatprep.mubr.f32.mxu0 0.0
  %280 = vmatmul.mubr.f32.gmra.mxu0 %v112
  %v281 = vpop.f32.mrf.mxu0
  %v282 = vadd.f32 0.0, %v281
  %v283 = vpop.f32.mrf.mxu0
  %284 = vmatprep.mubr.f32.mxu0 0.0
  %285 = vmatmul.mubr.f32.gmra.mxu0 %v115
  %v286 = vpop.f32.mrf.mxu0
  %v287 = vadd.f32 0.0, %v286
  %v288 = vpop.f32.mrf.mxu0
  %289 = vmatprep.mubr.f32.mxu0 0.0
  %290 = vmatmul.mubr.f32.gmra.mxu0 %v118
  %v291 = vpop.f32.mrf.mxu0
  %v292 = vadd.f32 0.0, %v291
  %v293 = vpop.f32.mrf.mxu0
  %294 = vmatprep.mubr.f32.mxu0 0.0
  %295 = vmatmul.mubr.f32.gmra.mxu0 %v121
  %v296 = vpop.f32.mrf.mxu0
  %v297 = vadd.f32 0.0, %v296
  %v298 = vpop.f32.mrf.mxu0
  %299 = vmatprep.mubr.f32.mxu0 0.0
  %300 = vmatmul.mubr.f32.gmra.mxu0 %v124
  %v301 = vpop.f32.mrf.mxu0
  %v302 = vadd.f32 0.0, %v301
  %v303 = vpop.f32.mrf.mxu0
  %304 = vmatprep.mubr.f32.mxu0 0.0
  %305 = vmatmul.mubr.f32.gmra.mxu0 %v127
  %v306 = vpop.f32.mrf.mxu0
  %v307 = vadd.f32 0.0, %v306
  %v308 = vpop.f32.mrf.mxu0
  %309 = vmatprep.mubr.f32.mxu0 0.0
  %310 = vmatmul.mubr.f32.gmra.mxu0 %v130
  %v311 = vpop.f32.mrf.mxu0
  %v312 = vadd.f32 0.0, %v311
  %v313 = vpop.f32.mrf.mxu0
  %314 = vmatprep.mubr.f32.mxu0 0.0
  %315 = vmatmul.mubr.f32.gmra.mxu0 %v133
  %v316 = vpop.f32.mrf.mxu0
  %v317 = vadd.f32 0.0, %v316
  %v318 = vpop.f32.mrf.mxu0
  %319 = vmatprep.mubr.f32.mxu0 0.0
  %320 = vmatmul.mubr.f32.gmra.mxu0 %v136
  %v321 = vpop.f32.mrf.mxu0
  %v322 = vadd.f32 0.0, %v321
  %v323 = vpop.f32.mrf.mxu0
  %324 = vmatprep.mubr.f32.mxu0 0.0
  %325 = vmatmul.mubr.f32.gmra.mxu0 %v139
  %v326 = vpop.f32.mrf.mxu0
  %v327 = vadd.f32 0.0, %v326
  %v328 = vpop.f32.mrf.mxu0
  %329 = vmatprep.mubr.f32.mxu0 0.0
  %330 = vmatmul.mubr.f32.gmra.mxu0 %v142
  %v331 = vpop.f32.mrf.mxu0
  %v332 = vadd.f32 0.0, %v331
  %v333 = vpop.f32.mrf.mxu0
  %334 = vmatprep.mubr.f32.mxu0 0.0
  %335 = vmatmul.mubr.f32.gmra.mxu0 %v145
  %v336 = vpop.f32.mrf.mxu0
  %v337 = vadd.f32 0.0, %v336
  %v338 = vpop.f32.mrf.mxu0
  %339 = vdwg.mxu0
  %v340 = vlaneseq
  %v341 = vand.u32 %v340, 127
  %v342 = vstv %s64
  %v343 = vadd.s32 %v342, %v341
  %vm344 = vcmp.lt.s32.totalorder %v343, 16
  %v345 = vsel %vm344, %v262, -1e+30
  %v346 = vsel %vm344, %v267, -1e+30
  %v347 = vsel %vm344, %v272, -1e+30
  %v348 = vsel %vm344, %v277, -1e+30
  %v349 = vsel %vm344, %v282, -1e+30
  %v350 = vsel %vm344, %v287, -1e+30
  %v351 = vsel %vm344, %v292, -1e+30
  %v352 = vsel %vm344, %v297, -1e+30
  %v353 = vsel %vm344, %v302, -1e+30
  %v354 = vsel %vm344, %v307, -1e+30
  %v355 = vsel %vm344, %v312, -1e+30
  %v356 = vsel %vm344, %v317, -1e+30
  %v357 = vsel %vm344, %v322, -1e+30
  %v358 = vsel %vm344, %v327, -1e+30
  %v359 = vsel %vm344, %v332, -1e+30
  %v360 = vsel %vm344, %v337, -1e+30
  %v361 = vld [vmem:[#allocation2] sm:$0xff]
  %v362 = vld [vmem:[#allocation2 + $0x8] sm:$0xff]
  %v363 = vld [vmem:[#allocation2 + $0x10] sm:$0xff]
  %v364 = vld [vmem:[#allocation2 + $0x18] sm:$0xff]
  %v365 = vld [vmem:[#allocation2 + $0x20] sm:$0xff]
  %v366 = vld [vmem:[#allocation2 + $0x28] sm:$0xff]
  %v367 = vld [vmem:[#allocation2 + $0x30] sm:$0xff]
  %v368 = vld [vmem:[#allocation2 + $0x38] sm:$0xff]
  %v369 = vld [vmem:[#allocation2 + $0x40] sm:$0xff]
  %v370 = vld [vmem:[#allocation2 + $0x48] sm:$0xff]
  %v371 = vld [vmem:[#allocation2 + $0x50] sm:$0xff]
  %v372 = vld [vmem:[#allocation2 + $0x58] sm:$0xff]
  %v373 = vld [vmem:[#allocation2 + $0x60] sm:$0xff]
  %v374 = vld [vmem:[#allocation2 + $0x68] sm:$0xff]
  %v375 = vld [vmem:[#allocation2 + $0x70] sm:$0xff]
  %v376 = vld [vmem:[#allocation2 + $0x78] sm:$0xff]
  %377 = vmax.xlane.f32.xlu0 %v345
  %v378 = vpop.xlane.xlu0 %377
  %379 = vmax.xlane.f32.xlu0 %v346
  %v380 = vpop.xlane.xlu0 %379
  %381 = vmax.xlane.f32.xlu0 %v347
  %v382 = vpop.xlane.xlu0 %381
  %383 = vmax.xlane.f32.xlu0 %v348
  %v384 = vpop.xlane.xlu0 %383
  %385 = vmax.xlane.f32.xlu0 %v349
  %v386 = vpop.xlane.xlu0 %385
  %387 = vmax.xlane.f32.xlu0 %v350
  %v388 = vpop.xlane.xlu0 %387
  %389 = vmax.xlane.f32.xlu0 %v351
  %v390 = vpop.xlane.xlu0 %389
  %391 = vmax.xlane.f32.xlu0 %v352
  %v392 = vpop.xlane.xlu0 %391
  %393 = vmax.xlane.f32.xlu0 %v353
  %v394 = vpop.xlane.xlu0 %393
  %395 = vmax.xlane.f32.xlu0 %v354
  %v396 = vpop.xlane.xlu0 %395
  %397 = vmax.xlane.f32.xlu0 %v355
  %v398 = vpop.xlane.xlu0 %397
  %399 = vmax.xlane.f32.xlu0 %v356
  %v400 = vpop.xlane.xlu0 %399
  %401 = vmax.xlane.f32.xlu0 %v357
  %v402 = vpop.xlane.xlu0 %401
  %403 = vmax.xlane.f32.xlu0 %v358
  %v404 = vpop.xlane.xlu0 %403
  %405 = vmax.xlane.f32.xlu0 %v359
  %v406 = vpop.xlane.xlu0 %405
  %407 = vmax.xlane.f32.xlu0 %v360
  %v408 = vpop.xlane.xlu0 %407
  %v409 = vmax.f32 %v361, %v378
  %v410 = vmax.f32 %v362, %v380
  %v411 = vmax.f32 %v363, %v382
  %v412 = vmax.f32 %v364, %v384
  %v413 = vmax.f32 %v365, %v386
  %v414 = vmax.f32 %v366, %v388
  %v415 = vmax.f32 %v367, %v390
  %v416 = vmax.f32 %v368, %v392
  %v417 = vmax.f32 %v369, %v394
  %v418 = vmax.f32 %v370, %v396
  %v419 = vmax.f32 %v371, %v398
  %v420 = vmax.f32 %v372, %v400
  %v421 = vmax.f32 %v373, %v402
  %v422 = vmax.f32 %v374, %v404
  %v423 = vmax.f32 %v375, %v406
  %v424 = vmax.f32 %v376, %v408
  %v425 = vsub.f32 %v361, %v409
  %v426 = vsub.f32 %v362, %v410
  %v427 = vsub.f32 %v363, %v411
  %v428 = vsub.f32 %v364, %v412
  %v429 = vsub.f32 %v365, %v413
  %v430 = vsub.f32 %v366, %v414
  %v431 = vsub.f32 %v367, %v415
  %v432 = vsub.f32 %v368, %v416
  %v433 = vsub.f32 %v369, %v417
  %v434 = vsub.f32 %v370, %v418
  %v435 = vsub.f32 %v371, %v419
  %v436 = vsub.f32 %v372, %v420
  %v437 = vsub.f32 %v373, %v421
  %v438 = vsub.f32 %v374, %v422
  %v439 = vsub.f32 %v375, %v423
  %v440 = vsub.f32 %v376, %v424
  %v441 = vmul.f32 %v425, 1.442695
  %v442 = vpow.pop %v441
  %v443 = vmul.f32 %v426, 1.442695
  %v444 = vpow.pop %v443
  %v445 = vmul.f32 %v427, 1.442695
  %v446 = vpow.pop %v445
  %v447 = vmul.f32 %v428, 1.442695
  %v448 = vpow.pop %v447
  %v449 = vmul.f32 %v429, 1.442695
  %v450 = vpow.pop %v449
  %v451 = vmul.f32 %v430, 1.442695
  %v452 = vpow.pop %v451
  %v453 = vmul.f32 %v431, 1.442695
  %v454 = vpow.pop %v453
  %v455 = vmul.f32 %v432, 1.442695
  %v456 = vpow.pop %v455
  %v457 = vmul.f32 %v433, 1.442695
  %v458 = vpow.pop %v457
  %v459 = vmul.f32 %v434, 1.442695
  %v460 = vpow.pop %v459
  %v461 = vmul.f32 %v435, 1.442695
  %v462 = vpow.pop %v461
  %v463 = vmul.f32 %v436, 1.442695
  %v464 = vpow.pop %v463
  %v465 = vmul.f32 %v437, 1.442695
  %v466 = vpow.pop %v465
  %v467 = vmul.f32 %v438, 1.442695
  %v468 = vpow.pop %v467
  %v469 = vmul.f32 %v439, 1.442695
  %v470 = vpow.pop %v469
  %v471 = vmul.f32 %v440, 1.442695
  %v472 = vpow.pop %v471
  %474 = vset.pattern.permute.xlu0 0
  %475 = vperm.xlu0 %474, %v409
  %v476 = vpop.permute.xlu0 %475
  %479 = vset.pattern.permute.xlu0 0
  %480 = vperm.xlu0 %479, %v410
  %v481 = vpop.permute.xlu0 %480
  %484 = vset.pattern.permute.xlu0 0
  %485 = vperm.xlu0 %484, %v411
  %v486 = vpop.permute.xlu0 %485
  %489 = vset.pattern.permute.xlu0 0
  %490 = vperm.xlu0 %489, %v412
  %v491 = vpop.permute.xlu0 %490
  %494 = vset.pattern.permute.xlu0 0
  %495 = vperm.xlu0 %494, %v413
  %v496 = vpop.permute.xlu0 %495
  %499 = vset.pattern.permute.xlu0 0
  %500 = vperm.xlu0 %499, %v414
  %v501 = vpop.permute.xlu0 %500
  %504 = vset.pattern.permute.xlu0 0
  %505 = vperm.xlu0 %504, %v415
  %v506 = vpop.permute.xlu0 %505
  %509 = vset.pattern.permute.xlu0 0
  %510 = vperm.xlu0 %509, %v416
  %v511 = vpop.permute.xlu0 %510
  %514 = vset.pattern.permute.xlu0 0
  %515 = vperm.xlu0 %514, %v417
  %v516 = vpop.permute.xlu0 %515
  %519 = vset.pattern.permute.xlu0 0
  %520 = vperm.xlu0 %519, %v418
  %v521 = vpop.permute.xlu0 %520
  %524 = vset.pattern.permute.xlu0 0
  %525 = vperm.xlu0 %524, %v419
  %v526 = vpop.permute.xlu0 %525
  %529 = vset.pattern.permute.xlu0 0
  %530 = vperm.xlu0 %529, %v420
  %v531 = vpop.permute.xlu0 %530
  %534 = vset.pattern.permute.xlu0 0
  %535 = vperm.xlu0 %534, %v421
  %v536 = vpop.permute.xlu0 %535
  %539 = vset.pattern.permute.xlu0 0
  %540 = vperm.xlu0 %539, %v422
  %v541 = vpop.permute.xlu0 %540
  %544 = vset.pattern.permute.xlu0 0
  %545 = vperm.xlu0 %544, %v423
  %v546 = vpop.permute.xlu0 %545
  %549 = vset.pattern.permute.xlu0 0
  %550 = vperm.xlu0 %549, %v424
  %v551 = vpop.permute.xlu0 %550
  %v553 = vsub.f32 %v345, %v476
  %v554 = vsub.f32 %v346, %v481
  %v555 = vsub.f32 %v347, %v486
  %v556 = vsub.f32 %v348, %v491
  %v557 = vsub.f32 %v349, %v496
  %v558 = vsub.f32 %v350, %v501
  %v559 = vsub.f32 %v351, %v506
  %v560 = vsub.f32 %v352, %v511
  %v561 = vsub.f32 %v353, %v516
  %v562 = vsub.f32 %v354, %v521
  %v563 = vsub.f32 %v355, %v526
  %v564 = vsub.f32 %v356, %v531
  %v565 = vsub.f32 %v357, %v536
  %v566 = vsub.f32 %v358, %v541
  %v567 = vsub.f32 %v359, %v546
  %v568 = vsub.f32 %v360, %v551
  %v569 = vmul.f32 %v553, 1.442695
  %v570 = vpow.pop %v569
  %v571 = vmul.f32 %v554, 1.442695
  %v572 = vpow.pop %v571
  %v573 = vmul.f32 %v555, 1.442695
  %v574 = vpow.pop %v573
  %v575 = vmul.f32 %v556, 1.442695
  %v576 = vpow.pop %v575
  %v577 = vmul.f32 %v557, 1.442695
  %v578 = vpow.pop %v577
  %v579 = vmul.f32 %v558, 1.442695
  %v580 = vpow.pop %v579
  %v581 = vmul.f32 %v559, 1.442695
  %v582 = vpow.pop %v581
  %v583 = vmul.f32 %v560, 1.442695
  %v584 = vpow.pop %v583
  %v585 = vmul.f32 %v561, 1.442695
  %v586 = vpow.pop %v585
  %v587 = vmul.f32 %v562, 1.442695
  %v588 = vpow.pop %v587
  %v589 = vmul.f32 %v563, 1.442695
  %v590 = vpow.pop %v589
  %v591 = vmul.f32 %v564, 1.442695
  %v592 = vpow.pop %v591
  %v593 = vmul.f32 %v565, 1.442695
  %v594 = vpow.pop %v593
  %v595 = vmul.f32 %v566, 1.442695
  %v596 = vpow.pop %v595
  %v597 = vmul.f32 %v567, 1.442695
  %v598 = vpow.pop %v597
  %v599 = vmul.f32 %v568, 1.442695
  %v600 = vpow.pop %v599
  %v601 = vld [vmem:[#allocation3] sm:$0xff]
  %v602 = vld [vmem:[#allocation3 + $0x8] sm:$0xff]
  %v603 = vld [vmem:[#allocation3 + $0x10] sm:$0xff]
  %v604 = vld [vmem:[#allocation3 + $0x18] sm:$0xff]
  %v605 = vld [vmem:[#allocation3 + $0x20] sm:$0xff]
  %v606 = vld [vmem:[#allocation3 + $0x28] sm:$0xff]
  %v607 = vld [vmem:[#allocation3 + $0x30] sm:$0xff]
  %v608 = vld [vmem:[#allocation3 + $0x38] sm:$0xff]
  %v609 = vld [vmem:[#allocation3 + $0x40] sm:$0xff]
  %v610 = vld [vmem:[#allocation3 + $0x48] sm:$0xff]
  %v611 = vld [vmem:[#allocation3 + $0x50] sm:$0xff]
  %v612 = vld [vmem:[#allocation3 + $0x58] sm:$0xff]
  %v613 = vld [vmem:[#allocation3 + $0x60] sm:$0xff]
  %v614 = vld [vmem:[#allocation3 + $0x68] sm:$0xff]
  %v615 = vld [vmem:[#allocation3 + $0x70] sm:$0xff]
  %v616 = vld [vmem:[#allocation3 + $0x78] sm:$0xff]
  %v617 = vmul.f32 %v442, %v601
  %v618 = vmul.f32 %v444, %v602
  %v619 = vmul.f32 %v446, %v603
  %v620 = vmul.f32 %v448, %v604
  %v621 = vmul.f32 %v450, %v605
  %v622 = vmul.f32 %v452, %v606
  %v623 = vmul.f32 %v454, %v607
  %v624 = vmul.f32 %v456, %v608
  %v625 = vmul.f32 %v458, %v609
  %v626 = vmul.f32 %v460, %v610
  %v627 = vmul.f32 %v462, %v611
  %v628 = vmul.f32 %v464, %v612
  %v629 = vmul.f32 %v466, %v613
  %v630 = vmul.f32 %v468, %v614
  %v631 = vmul.f32 %v470, %v615
  %v632 = vmul.f32 %v472, %v616
  %633 = vadd.xlane.f32.xlu0 %v570
  %v634 = vpop.xlane.xlu0 %633
  %635 = vadd.xlane.f32.xlu0 %v572
  %v636 = vpop.xlane.xlu0 %635
  %637 = vadd.xlane.f32.xlu0 %v574
  %v638 = vpop.xlane.xlu0 %637
  %639 = vadd.xlane.f32.xlu0 %v576
  %v640 = vpop.xlane.xlu0 %639
  %641 = vadd.xlane.f32.xlu0 %v578
  %v642 = vpop.xlane.xlu0 %641
  %643 = vadd.xlane.f32.xlu0 %v580
  %v644 = vpop.xlane.xlu0 %643
  %645 = vadd.xlane.f32.xlu0 %v582
  %v646 = vpop.xlane.xlu0 %645
  %647 = vadd.xlane.f32.xlu0 %v584
  %v648 = vpop.xlane.xlu0 %647
  %649 = vadd.xlane.f32.xlu0 %v586
  %v650 = vpop.xlane.xlu0 %649
  %651 = vadd.xlane.f32.xlu0 %v588
  %v652 = vpop.xlane.xlu0 %651
  %653 = vadd.xlane.f32.xlu0 %v590
  %v654 = vpop.xlane.xlu0 %653
  %655 = vadd.xlane.f32.xlu0 %v592
  %v656 = vpop.xlane.xlu0 %655
  %657 = vadd.xlane.f32.xlu0 %v594
  %v658 = vpop.xlane.xlu0 %657
  %659 = vadd.xlane.f32.xlu0 %v596
  %v660 = vpop.xlane.xlu0 %659
  %661 = vadd.xlane.f32.xlu0 %v598
  %v662 = vpop.xlane.xlu0 %661
  %663 = vadd.xlane.f32.xlu0 %v600
  %v664 = vpop.xlane.xlu0 %663
  %v665 = vadd.f32 %v617, %v634
  %v666 = vadd.f32 %v618, %v636
  %v667 = vadd.f32 %v619, %v638
  %v668 = vadd.f32 %v620, %v640
  %v669 = vadd.f32 %v621, %v642
  %v670 = vadd.f32 %v622, %v644
  %v671 = vadd.f32 %v623, %v646
  %v672 = vadd.f32 %v624, %v648
  %v673 = vadd.f32 %v625, %v650
  %v674 = vadd.f32 %v626, %v652
  %v675 = vadd.f32 %v627, %v654
  %v676 = vadd.f32 %v628, %v656
  %v677 = vadd.f32 %v629, %v658
  %v678 = vadd.f32 %v630, %v660
  %v679 = vadd.f32 %v631, %v662
  %v680 = vadd.f32 %v632, %v664
  %vm681 = vcmask 7168
  %682 = vst.msk [vmem:[#allocation3] sm:$0xff] %vm681, %v665
  %683 = vst.msk [vmem:[#allocation3 + $0x8] sm:$0xff] %vm681, %v666
  %684 = vst.msk [vmem:[#allocation3 + $0x10] sm:$0xff] %vm681, %v667
  %685 = vst.msk [vmem:[#allocation3 + $0x18] sm:$0xff] %vm681, %v668
  %686 = vst.msk [vmem:[#allocation3 + $0x20] sm:$0xff] %vm681, %v669
  %687 = vst.msk [vmem:[#allocation3 + $0x28] sm:$0xff] %vm681, %v670
  %688 = vst.msk [vmem:[#allocation3 + $0x30] sm:$0xff] %vm681, %v671
  %689 = vst.msk [vmem:[#allocation3 + $0x38] sm:$0xff] %vm681, %v672
  %690 = vst.msk [vmem:[#allocation3 + $0x40] sm:$0xff] %vm681, %v673
  %691 = vst.msk [vmem:[#allocation3 + $0x48] sm:$0xff] %vm681, %v674
  %692 = vst.msk [vmem:[#allocation3 + $0x50] sm:$0xff] %vm681, %v675
  %693 = vst.msk [vmem:[#allocation3 + $0x58] sm:$0xff] %vm681, %v676
  %694 = vst.msk [vmem:[#allocation3 + $0x60] sm:$0xff] %vm681, %v677
  %695 = vst.msk [vmem:[#allocation3 + $0x68] sm:$0xff] %vm681, %v678
  %696 = vst.msk [vmem:[#allocation3 + $0x70] sm:$0xff] %vm681, %v679
  %697 = vst.msk [vmem:[#allocation3 + $0x78] sm:$0xff] %vm681, %v680
  %698 = vst.msk [vmem:[#allocation2] sm:$0xff] %vm681, %v409
  %699 = vst.msk [vmem:[#allocation2 + $0x8] sm:$0xff] %vm681, %v410
  %700 = vst.msk [vmem:[#allocation2 + $0x10] sm:$0xff] %vm681, %v411
  %701 = vst.msk [vmem:[#allocation2 + $0x18] sm:$0xff] %vm681, %v412
  %702 = vst.msk [vmem:[#allocation2 + $0x20] sm:$0xff] %vm681, %v413
  %703 = vst.msk [vmem:[#allocation2 + $0x28] sm:$0xff] %vm681, %v414
  %704 = vst.msk [vmem:[#allocation2 + $0x30] sm:$0xff] %vm681, %v415
  %705 = vst.msk [vmem:[#allocation2 + $0x38] sm:$0xff] %vm681, %v416
  %706 = vst.msk [vmem:[#allocation2 + $0x40] sm:$0xff] %vm681, %v417
  %707 = vst.msk [vmem:[#allocation2 + $0x48] sm:$0xff] %vm681, %v418
  %708 = vst.msk [vmem:[#allocation2 + $0x50] sm:$0xff] %vm681, %v419
  %709 = vst.msk [vmem:[#allocation2 + $0x58] sm:$0xff] %vm681, %v420
  %710 = vst.msk [vmem:[#allocation2 + $0x60] sm:$0xff] %vm681, %v421
  %711 = vst.msk [vmem:[#allocation2 + $0x68] sm:$0xff] %vm681, %v422
  %712 = vst.msk [vmem:[#allocation2 + $0x70] sm:$0xff] %vm681, %v423
  %713 = vst.msk [vmem:[#allocation2 + $0x78] sm:$0xff] %vm681, %v424
  %s714 = sadd.s32 0, 1
  %s715 = smul.u32 %s714, 128
  %p716 = scmp.lt.s32.totalorder %s64, %s715
  %s717 = sadd.s32 0, 1
  %s718 = smul.u32 %s717, 128
  %s719 = smul.u32 0, 128
  %p720 = scmp.gt.s32.totalorder %s718, %s719
  %p721 = pnand %p716, %p720
  %p722 = pneg %p721
  // Predicated region
  $region14: #{tpu_custom_call.1} parent=0 // pred_check
    _
  $region15: #{tpu_custom_call.1} parent=0 // pred_check_branch
    %724 = sbr.rel (%p721) target = $region17
  $region16: #{tpu_custom_call.1} parent=0 // pred_region
    %v725 = vlaneseq
    %v726 = vshrl.u32 %v725, 7
    %v727 = vadd.s32 %v726, 8
    %v728 = vadd.s32 %v726, 16
    %v729 = vadd.s32 %v726, 24
    %v730 = vadd.s32 %v726, 32
    %v731 = vadd.s32 %v726, 40
    %v732 = vadd.s32 %v726, 48
    %v733 = vadd.s32 %v726, 56
    %v734 = vadd.s32 %v726, 64
    %v735 = vadd.s32 %v726, 72
    %v736 = vadd.s32 %v726, 80
    %v737 = vadd.s32 %v726, 88
    %v738 = vadd.s32 %v726, 96
    %v739 = vadd.s32 %v726, 104
    %v740 = vadd.s32 %v726, 112
    %v741 = vadd.s32 %v726, 120
    %v742 = vstv %s719
    %v743 = vadd.s32 %v742, %v726
    %v744 = vadd.s32 %v742, %v727
    %v745 = vadd.s32 %v742, %v728
    %v746 = vadd.s32 %v742, %v729
    %v747 = vadd.s32 %v742, %v730
    %v748 = vadd.s32 %v742, %v731
    %v749 = vadd.s32 %v742, %v732
    %v750 = vadd.s32 %v742, %v733
    %v751 = vadd.s32 %v742, %v734
    %v752 = vadd.s32 %v742, %v735
    %v753 = vadd.s32 %v742, %v736
    %v754 = vadd.s32 %v742, %v737
    %v755 = vadd.s32 %v742, %v738
    %v756 = vadd.s32 %v742, %v739
    %v757 = vadd.s32 %v742, %v740
    %v758 = vadd.s32 %v742, %v741
    %v759 = vld [vmem:[#allocation4] sm:$0xff]
    %v760 = vld [vmem:[#allocation4 + $0x8] sm:$0xff]
    %v761 = vld [vmem:[#allocation4 + $0x10] sm:$0xff]
    %v762 = vld [vmem:[#allocation4 + $0x18] sm:$0xff]
    %v763 = vld [vmem:[#allocation4 + $0x20] sm:$0xff]
    %v764 = vld [vmem:[#allocation4 + $0x28] sm:$0xff]
    %v765 = vld [vmem:[#allocation4 + $0x30] sm:$0xff]
    %v766 = vld [vmem:[#allocation4 + $0x38] sm:$0xff]
    %v767 = vld [vmem:[#allocation4 + $0x40] sm:$0xff]
    %v768 = vld [vmem:[#allocation4 + $0x48] sm:$0xff]
    %v769 = vld [vmem:[#allocation4 + $0x50] sm:$0xff]
    %v770 = vld [vmem:[#allocation4 + $0x58] sm:$0xff]
    %v771 = vld [vmem:[#allocation4 + $0x60] sm:$0xff]
    %v772 = vld [vmem:[#allocation4 + $0x68] sm:$0xff]
    %v773 = vld [vmem:[#allocation4 + $0x70] sm:$0xff]
    %v774 = vld [vmem:[#allocation4 + $0x78] sm:$0xff]
    %vm775 = vcmp.eq.s32.totalorder %v743, %v343
    %vm776 = vcmp.eq.s32.totalorder %v744, %v343
    %vm777 = vcmp.eq.s32.totalorder %v745, %v343
    %vm778 = vcmp.eq.s32.totalorder %v746, %v343
    %vm779 = vcmp.eq.s32.totalorder %v747, %v343
    %vm780 = vcmp.eq.s32.totalorder %v748, %v343
    %vm781 = vcmp.eq.s32.totalorder %v749, %v343
    %vm782 = vcmp.eq.s32.totalorder %v750, %v343
    %vm783 = vcmp.eq.s32.totalorder %v751, %v343
    %vm784 = vcmp.eq.s32.totalorder %v752, %v343
    %vm785 = vcmp.eq.s32.totalorder %v753, %v343
    %vm786 = vcmp.eq.s32.totalorder %v754, %v343
    %vm787 = vcmp.eq.s32.totalorder %v755, %v343
    %vm788 = vcmp.eq.s32.totalorder %v756, %v343
    %vm789 = vcmp.eq.s32.totalorder %v757, %v343
    %vm790 = vcmp.eq.s32.totalorder %v758, %v343
    %v791 = vsel %vm775, %v345, 0.0
    %v792 = vsel %vm776, %v346, 0.0
    %v793 = vsel %vm777, %v347, 0.0
    %v794 = vsel %vm778, %v348, 0.0
    %v795 = vsel %vm779, %v349, 0.0
    %v796 = vsel %vm780, %v350, 0.0
    %v797 = vsel %vm781, %v351, 0.0
    %v798 = vsel %vm782, %v352, 0.0
    %v799 = vsel %vm783, %v353, 0.0
    %v800 = vsel %vm784, %v354, 0.0
    %v801 = vsel %vm785, %v355, 0.0
    %v802 = vsel %vm786, %v356, 0.0
    %v803 = vsel %vm787, %v357, 0.0
    %v804 = vsel %vm788, %v358, 0.0
    %v805 = vsel %vm789, %v359, 0.0
    %v806 = vsel %vm790, %v360, 0.0
    %807 = vadd.xlane.f32.xlu0 %v791
    %v808 = vpop.xlane.xlu0 %807
    %809 = vadd.xlane.f32.xlu0 %v792
    %v810 = vpop.xlane.xlu0 %809
    %811 = vadd.xlane.f32.xlu0 %v793
    %v812 = vpop.xlane.xlu0 %811
    %813 = vadd.xlane.f32.xlu0 %v794
    %v814 = vpop.xlane.xlu0 %813
    %815 = vadd.xlane.f32.xlu0 %v795
    %v816 = vpop.xlane.xlu0 %815
    %817 = vadd.xlane.f32.xlu0 %v796
    %v818 = vpop.xlane.xlu0 %817
    %819 = vadd.xlane.f32.xlu0 %v797
    %v820 = vpop.xlane.xlu0 %819
    %821 = vadd.xlane.f32.xlu0 %v798
    %v822 = vpop.xlane.xlu0 %821
    %823 = vadd.xlane.f32.xlu0 %v799
    %v824 = vpop.xlane.xlu0 %823
    %825 = vadd.xlane.f32.xlu0 %v800
    %v826 = vpop.xlane.xlu0 %825
    %827 = vadd.xlane.f32.xlu0 %v801
    %v828 = vpop.xlane.xlu0 %827
    %829 = vadd.xlane.f32.xlu0 %v802
    %v830 = vpop.xlane.xlu0 %829
    %831 = vadd.xlane.f32.xlu0 %v803
    %v832 = vpop.xlane.xlu0 %831
    %833 = vadd.xlane.f32.xlu0 %v804
    %v834 = vpop.xlane.xlu0 %833
    %835 = vadd.xlane.f32.xlu0 %v805
    %v836 = vpop.xlane.xlu0 %835
    %837 = vadd.xlane.f32.xlu0 %v806
    %v838 = vpop.xlane.xlu0 %837
    %v839 = vadd.f32 %v759, %v808
    %v840 = vadd.f32 %v760, %v810
    %v841 = vadd.f32 %v761, %v812
    %v842 = vadd.f32 %v762, %v814
    %v843 = vadd.f32 %v763, %v816
    %v844 = vadd.f32 %v764, %v818
    %v845 = vadd.f32 %v765, %v820
    %v846 = vadd.f32 %v766, %v822
    %v847 = vadd.f32 %v767, %v824
    %v848 = vadd.f32 %v768, %v826
    %v849 = vadd.f32 %v769, %v828
    %v850 = vadd.f32 %v770, %v830
    %v851 = vadd.f32 %v771, %v832
    %v852 = vadd.f32 %v772, %v834
    %v853 = vadd.f32 %v773, %v836
    %v854 = vadd.f32 %v774, %v838
    %855 = vst.msk [vmem:[#allocation4] sm:$0xff] %vm681, %v839
    %856 = vst.msk [vmem:[#allocation4 + $0x8] sm:$0xff] %vm681, %v840
    %857 = vst.msk [vmem:[#allocation4 + $0x10] sm:$0xff] %vm681, %v841
    %858 = vst.msk [vmem:[#allocation4 + $0x18] sm:$0xff] %vm681, %v842
    %859 = vst.msk [vmem:[#allocation4 + $0x20] sm:$0xff] %vm681, %v843
    %860 = vst.msk [vmem:[#allocation4 + $0x28] sm:$0xff] %vm681, %v844
    %861 = vst.msk [vmem:[#allocation4 + $0x30] sm:$0xff] %vm681, %v845
    %862 = vst.msk [vmem:[#allocation4 + $0x38] sm:$0xff] %vm681, %v846
    %863 = vst.msk [vmem:[#allocation4 + $0x40] sm:$0xff] %vm681, %v847
    %864 = vst.msk [vmem:[#allocation4 + $0x48] sm:$0xff] %vm681, %v848
    %865 = vst.msk [vmem:[#allocation4 + $0x50] sm:$0xff] %vm681, %v849
    %866 = vst.msk [vmem:[#allocation4 + $0x58] sm:$0xff] %vm681, %v850
    %867 = vst.msk [vmem:[#allocation4 + $0x60] sm:$0xff] %vm681, %v851
    %868 = vst.msk [vmem:[#allocation4 + $0x68] sm:$0xff] %vm681, %v852
    %869 = vst.msk [vmem:[#allocation4 + $0x70] sm:$0xff] %vm681, %v853
    %870 = vst.msk [vmem:[#allocation4 + $0x78] sm:$0xff] %vm681, %v854
  $region17: #{tpu_custom_call.1} parent=0 // pred_fallthru
    _
  // Predicated region
  $region18: #{tpu_custom_call.1} parent=0 // pred_check
    %p871 = pneg %p11
  $region19: #{tpu_custom_call.1} parent=0 // pred_check_branch
    %873 = sbr.rel (%p871) target = $region21
  $region20: #{tpu_custom_call.1} parent=0 // pred_region
    %v874 = vld [vmem:[#allocation4] sm:$0xff]
    %v875 = vld [vmem:[#allocation4 + $0x8] sm:$0xff]
    %v876 = vld [vmem:[#allocation4 + $0x10] sm:$0xff]
    %v877 = vld [vmem:[#allocation4 + $0x18] sm:$0xff]
    %v878 = vld [vmem:[#allocation4 + $0x20] sm:$0xff]
    %v879 = vld [vmem:[#allocation4 + $0x28] sm:$0xff]
    %v880 = vld [vmem:[#allocation4 + $0x30] sm:$0xff]
    %v881 = vld [vmem:[#allocation4 + $0x38] sm:$0xff]
    %v882 = vld [vmem:[#allocation4 + $0x40] sm:$0xff]
    %v883 = vld [vmem:[#allocation4 + $0x48] sm:$0xff]
    %v884 = vld [vmem:[#allocation4 + $0x50] sm:$0xff]
    %v885 = vld [vmem:[#allocation4 + $0x58] sm:$0xff]
    %v886 = vld [vmem:[#allocation4 + $0x60] sm:$0xff]
    %v887 = vld [vmem:[#allocation4 + $0x68] sm:$0xff]
    %v888 = vld [vmem:[#allocation4 + $0x70] sm:$0xff]
    %v889 = vld [vmem:[#allocation4 + $0x78] sm:$0xff]
    %v890 = vld [vmem:[#allocation2] sm:$0xff]
    %v891 = vld [vmem:[#allocation2 + $0x8] sm:$0xff]
    %v892 = vld [vmem:[#allocation2 + $0x10] sm:$0xff]
    %v893 = vld [vmem:[#allocation2 + $0x18] sm:$0xff]
    %v894 = vld [vmem:[#allocation2 + $0x20] sm:$0xff]
    %v895 = vld [vmem:[#allocation2 + $0x28] sm:$0xff]
    %v896 = vld [vmem:[#allocation2 + $0x30] sm:$0xff]
    %v897 = vld [vmem:[#allocation2 + $0x38] sm:$0xff]
    %v898 = vld [vmem:[#allocation2 + $0x40] sm:$0xff]
    %v899 = vld [vmem:[#allocation2 + $0x48] sm:$0xff]
    %v900 = vld [vmem:[#allocation2 + $0x50] sm:$0xff]
    %v901 = vld [vmem:[#allocation2 + $0x58] sm:$0xff]
    %v902 = vld [vmem:[#allocation2 + $0x60] sm:$0xff]
    %v903 = vld [vmem:[#allocation2 + $0x68] sm:$0xff]
    %v904 = vld [vmem:[#allocation2 + $0x70] sm:$0xff]
    %v905 = vld [vmem:[#allocation2 + $0x78] sm:$0xff]
    %v906 = vsub.f32 %v874, %v890
    %v907 = vsub.f32 %v875, %v891
    %v908 = vsub.f32 %v876, %v892
    %v909 = vsub.f32 %v877, %v893
    %v910 = vsub.f32 %v878, %v894
    %v911 = vsub.f32 %v879, %v895
    %v912 = vsub.f32 %v880, %v896
    %v913 = vsub.f32 %v881, %v897
    %v914 = vsub.f32 %v882, %v898
    %v915 = vsub.f32 %v883, %v899
    %v916 = vsub.f32 %v884, %v900
    %v917 = vsub.f32 %v885, %v901
    %v918 = vsub.f32 %v886, %v902
    %v919 = vsub.f32 %v887, %v903
    %v920 = vsub.f32 %v888, %v904
    %v921 = vsub.f32 %v889, %v905
    %v922 = vmul.f32 %v906, 1.442695
    %v923 = vpow.pop %v922
    %v924 = vmul.f32 %v907, 1.442695
    %v925 = vpow.pop %v924
    %v926 = vmul.f32 %v908, 1.442695
    %v927 = vpow.pop %v926
    %v928 = vmul.f32 %v909, 1.442695
    %v929 = vpow.pop %v928
    %v930 = vmul.f32 %v910, 1.442695
    %v931 = vpow.pop %v930
    %v932 = vmul.f32 %v911, 1.442695
    %v933 = vpow.pop %v932
    %v934 = vmul.f32 %v912, 1.442695
    %v935 = vpow.pop %v934
    %v936 = vmul.f32 %v913, 1.442695
    %v937 = vpow.pop %v936
    %v938 = vmul.f32 %v914, 1.442695
    %v939 = vpow.pop %v938
    %v940 = vmul.f32 %v915, 1.442695
    %v941 = vpow.pop %v940
    %v942 = vmul.f32 %v916, 1.442695
    %v943 = vpow.pop %v942
    %v944 = vmul.f32 %v917, 1.442695
    %v945 = vpow.pop %v944
    %v946 = vmul.f32 %v918, 1.442695
    %v947 = vpow.pop %v946
    %v948 = vmul.f32 %v919, 1.442695
    %v949 = vpow.pop %v948
    %v950 = vmul.f32 %v920, 1.442695
    %v951 = vpow.pop %v950
    %v952 = vmul.f32 %v921, 1.442695
    %v953 = vpow.pop %v952
    %v954 = vld [vmem:[#allocation3] sm:$0xff]
    %v955 = vld [vmem:[#allocation3 + $0x8] sm:$0xff]
    %v956 = vld [vmem:[#allocation3 + $0x10] sm:$0xff]
    %v957 = vld [vmem:[#allocation3 + $0x18] sm:$0xff]
    %v958 = vld [vmem:[#allocation3 + $0x20] sm:$0xff]
    %v959 = vld [vmem:[#allocation3 + $0x28] sm:$0xff]
    %v960 = vld [vmem:[#allocation3 + $0x30] sm:$0xff]
    %v961 = vld [vmem:[#allocation3 + $0x38] sm:$0xff]
    %v962 = vld [vmem:[#allocation3 + $0x40] sm:$0xff]
    %v963 = vld [vmem:[#allocation3 + $0x48] sm:$0xff]
    %v964 = vld [vmem:[#allocation3 + $0x50] sm:$0xff]
    %v965 = vld [vmem:[#allocation3 + $0x58] sm:$0xff]
    %v966 = vld [vmem:[#allocation3 + $0x60] sm:$0xff]
    %v967 = vld [vmem:[#allocation3 + $0x68] sm:$0xff]
    %v968 = vld [vmem:[#allocation3 + $0x70] sm:$0xff]
    %v969 = vld [vmem:[#allocation3 + $0x78] sm:$0xff]
    %v970 = vrcp.pop %v954
    %v971 = vmul.f32 %v923, %v970
    %v972 = vrcp.pop %v955
    %v973 = vmul.f32 %v925, %v972
    %v974 = vrcp.pop %v956
    %v975 = vmul.f32 %v927, %v974
    %v976 = vrcp.pop %v957
    %v977 = vmul.f32 %v929, %v976
    %v978 = vrcp.pop %v958
    %v979 = vmul.f32 %v931, %v978
    %v980 = vrcp.pop %v959
    %v981 = vmul.f32 %v933, %v980
    %v982 = vrcp.pop %v960
    %v983 = vmul.f32 %v935, %v982
    %v984 = vrcp.pop %v961
    %v985 = vmul.f32 %v937, %v984
    %v986 = vrcp.pop %v962
    %v987 = vmul.f32 %v939, %v986
    %v988 = vrcp.pop %v963
    %v989 = vmul.f32 %v941, %v988
    %v990 = vrcp.pop %v964
    %v991 = vmul.f32 %v943, %v990
    %v992 = vrcp.pop %v965
    %v993 = vmul.f32 %v945, %v992
    %v994 = vrcp.pop %v966
    %v995 = vmul.f32 %v947, %v994
    %v996 = vrcp.pop %v967
    %v997 = vmul.f32 %v949, %v996
    %v998 = vrcp.pop %v968
    %v999 = vmul.f32 %v951, %v998
    %v1000 = vrcp.pop %v969
    %v1001 = vmul.f32 %v953, %v1000
    %v1002 = vsub.f32 1.0, %v971
    %v1003 = vsub.f32 1.0, %v973
    %v1004 = vsub.f32 1.0, %v975
    %v1005 = vsub.f32 1.0, %v977
    %v1006 = vsub.f32 1.0, %v979
    %v1007 = vsub.f32 1.0, %v981
    %v1008 = vsub.f32 1.0, %v983
    %v1009 = vsub.f32 1.0, %v985
    %v1010 = vsub.f32 1.0, %v987
    %v1011 = vsub.f32 1.0, %v989
    %v1012 = vsub.f32 1.0, %v991
    %v1013 = vsub.f32 1.0, %v993
    %v1014 = vsub.f32 1.0, %v995
    %v1015 = vsub.f32 1.0, %v997
    %v1016 = vsub.f32 1.0, %v999
    %v1017 = vsub.f32 1.0, %v1001
    %v1018 = vadd.f32 %v1002, 1e-08
    %v1019 = vadd.f32 %v1003, 1e-08
    %v1020 = vadd.f32 %v1004, 1e-08
    %v1021 = vadd.f32 %v1005, 1e-08
    %v1022 = vadd.f32 %v1006, 1e-08
    %v1023 = vadd.f32 %v1007, 1e-08
    %v1024 = vadd.f32 %v1008, 1e-08
    %v1025 = vadd.f32 %v1009, 1e-08
    %v1026 = vadd.f32 %v1010, 1e-08
    %v1027 = vadd.f32 %v1011, 1e-08
    %v1028 = vadd.f32 %v1012, 1e-08
    %v1029 = vadd.f32 %v1013, 1e-08
    %v1030 = vadd.f32 %v1014, 1e-08
    %v1031 = vadd.f32 %v1015, 1e-08
    %v1032 = vadd.f32 %v1016, 1e-08
    %v1033 = vadd.f32 %v1017, 1e-08
    %v1034 = vrcp.pop %v1018
    %v1035 = vmul.f32 %v971, %v1034
    %v1036 = vrcp.pop %v1019
    %v1037 = vmul.f32 %v973, %v1036
    %v1038 = vrcp.pop %v1020
    %v1039 = vmul.f32 %v975, %v1038
    %v1040 = vrcp.pop %v1021
    %v1041 = vmul.f32 %v977, %v1040
    %v1042 = vrcp.pop %v1022
    %v1043 = vmul.f32 %v979, %v1042
    %v1044 = vrcp.pop %v1023
    %v1045 = vmul.f32 %v981, %v1044
    %v1046 = vrcp.pop %v1024
    %v1047 = vmul.f32 %v983, %v1046
    %v1048 = vrcp.pop %v1025
    %v1049 = vmul.f32 %v985, %v1048
    %v1050 = vrcp.pop %v1026
    %v1051 = vmul.f32 %v987, %v1050
    %v1052 = vrcp.pop %v1027
    %v1053 = vmul.f32 %v989, %v1052
    %v1054 = vrcp.pop %v1028
    %v1055 = vmul.f32 %v991, %v1054
    %v1056 = vrcp.pop %v1029
    %v1057 = vmul.f32 %v993, %v1056
    %v1058 = vrcp.pop %v1030
    %v1059 = vmul.f32 %v995, %v1058
    %v1060 = vrcp.pop %v1031
    %v1061 = vmul.f32 %v997, %v1060
    %v1062 = vrcp.pop %v1032
    %v1063 = vmul.f32 %v999, %v1062
    %v1064 = vrcp.pop %v1033
    %v1065 = vmul.f32 %v1001, %v1064
    %v1066 = vmax.f32 %v1035, 1e-08
    %v1067 = vmax.f32 %v1037, 1e-08
    %v1068 = vmax.f32 %v1039, 1e-08
    %v1069 = vmax.f32 %v1041, 1e-08
    %v1070 = vmax.f32 %v1043, 1e-08
    %v1071 = vmax.f32 %v1045, 1e-08
    %v1072 = vmax.f32 %v1047, 1e-08
    %v1073 = vmax.f32 %v1049, 1e-08
    %v1074 = vmax.f32 %v1051, 1e-08
    %v1075 = vmax.f32 %v1053, 1e-08
    %v1076 = vmax.f32 %v1055, 1e-08
    %v1077 = vmax.f32 %v1057, 1e-08
    %v1078 = vmax.f32 %v1059, 1e-08
    %v1079 = vmax.f32 %v1061, 1e-08
    %v1080 = vmax.f32 %v1063, 1e-08
    %v1081 = vmax.f32 %v1065, 1e-08
    %v1082 = vlog2.pop %v1066
    %v1083 = vmul.f32 %v1082, 0.6931472
    %v1084 = vlog2.pop %v1067
    %v1085 = vmul.f32 %v1084, 0.6931472
    %v1086 = vlog2.pop %v1068
    %v1087 = vmul.f32 %v1086, 0.6931472
    %v1088 = vlog2.pop %v1069
    %v1089 = vmul.f32 %v1088, 0.6931472
    %v1090 = vlog2.pop %v1070
    %v1091 = vmul.f32 %v1090, 0.6931472
    %v1092 = vlog2.pop %v1071
    %v1093 = vmul.f32 %v1092, 0.6931472
    %v1094 = vlog2.pop %v1072
    %v1095 = vmul.f32 %v1094, 0.6931472
    %v1096 = vlog2.pop %v1073
    %v1097 = vmul.f32 %v1096, 0.6931472
    %v1098 = vlog2.pop %v1074
    %v1099 = vmul.f32 %v1098, 0.6931472
    %v1100 = vlog2.pop %v1075
    %v1101 = vmul.f32 %v1100, 0.6931472
    %v1102 = vlog2.pop %v1076
    %v1103 = vmul.f32 %v1102, 0.6931472
    %v1104 = vlog2.pop %v1077
    %v1105 = vmul.f32 %v1104, 0.6931472
    %v1106 = vlog2.pop %v1078
    %v1107 = vmul.f32 %v1106, 0.6931472
    %v1108 = vlog2.pop %v1079
    %v1109 = vmul.f32 %v1108, 0.6931472
    %v1110 = vlog2.pop %v1080
    %v1111 = vmul.f32 %v1110, 0.6931472
    %v1112 = vlog2.pop %v1081
    %v1113 = vmul.f32 %v1112, 0.6931472
    %v1114 = vsub.f32 0.0, %v1083
    %v1115 = vsub.f32 0.0, %v1085
    %v1116 = vsub.f32 0.0, %v1087
    %v1117 = vsub.f32 0.0, %v1089
    %v1118 = vsub.f32 0.0, %v1091
    %v1119 = vsub.f32 0.0, %v1093
    %v1120 = vsub.f32 0.0, %v1095
    %v1121 = vsub.f32 0.0, %v1097
    %v1122 = vsub.f32 0.0, %v1099
    %v1123 = vsub.f32 0.0, %v1101
    %v1124 = vsub.f32 0.0, %v1103
    %v1125 = vsub.f32 0.0, %v1105
    %v1126 = vsub.f32 0.0, %v1107
    %v1127 = vsub.f32 0.0, %v1109
    %v1128 = vsub.f32 0.0, %v1111
    %v1129 = vsub.f32 0.0, %v1113
    %1130 = vst.msk [vmem:[%s2] sm:$0xff] %vm681, %v1114
    %1131 = vst.msk [vmem:[%s2 + $0x8] sm:$0xff] %vm681, %v1115
    %1132 = vst.msk [vmem:[%s2 + $0x10] sm:$0xff] %vm681, %v1116
    %1133 = vst.msk [vmem:[%s2 + $0x18] sm:$0xff] %vm681, %v1117
    %1134 = vst.msk [vmem:[%s2 + $0x20] sm:$0xff] %vm681, %v1118
    %1135 = vst.msk [vmem:[%s2 + $0x28] sm:$0xff] %vm681, %v1119
    %1136 = vst.msk [vmem:[%s2 + $0x30] sm:$0xff] %vm681, %v1120
    %1137 = vst.msk [vmem:[%s2 + $0x38] sm:$0xff] %vm681, %v1121
    %1138 = vst.msk [vmem:[%s2 + $0x40] sm:$0xff] %vm681, %v1122
    %1139 = vst.msk [vmem:[%s2 + $0x48] sm:$0xff] %vm681, %v1123
    %1140 = vst.msk [vmem:[%s2 + $0x50] sm:$0xff] %vm681, %v1124
    %1141 = vst.msk [vmem:[%s2 + $0x58] sm:$0xff] %vm681, %v1125
    %1142 = vst.msk [vmem:[%s2 + $0x60] sm:$0xff] %vm681, %v1126
    %1143 = vst.msk [vmem:[%s2 + $0x68] sm:$0xff] %vm681, %v1127
    %1144 = vst.msk [vmem:[%s2 + $0x70] sm:$0xff] %vm681, %v1128
    %1145 = vst.msk [vmem:[%s2 + $0x78] sm:$0xff] %vm681, %v1129
  $region21: #{tpu_custom_call.1} parent=0 // pred_fallthru
    _
  // Predicated region
  $region22: #{tpu_custom_call.1} parent=0 // pred_check
    _
  $region23: #{tpu_custom_call.1} parent=0 // pred_check_branch
    %1147 = sbr.rel (0) target = $region25
  $region24: #{tpu_custom_call.1} parent=0 // pred_region
    _
  $region25: #{tpu_custom_call.1} parent=0 // pred_fallthru
    _
  // Predicated region
  $region26: #{tpu_custom_call.1} parent=0 // pred_check
    _
  $region27: #{tpu_custom_call.1} parent=0 // pred_check_branch
    %1149 = sbr.rel (0) target = $region29
  $region28: #{tpu_custom_call.1} parent=0 // pred_region
    _
  $region29: #{tpu_custom_call.1} parent=0 // pred_fallthru
    _

</llo_original>
